<compile_context>
chip_gen: v7x
topology: tpu7x:2x2x1
jax: 0.10.0
libtpu: 0.0.40
codegen_flags: <defaults>
</compile_context>

<pallas_src>
import jax
import jax.numpy as jnp
from jax.experimental import pallas as pl
from jax.experimental.pallas import tpu as pltpu


def _mask_kernel(s_ref, x_ref, o_ref):
    # s_ref: (Rb, 1) per-row scale column; x_ref / o_ref: (Rb, Lb) data slab.
    # Lane-broadcast of the scale column is free on the VPU; cast at the store
    # so the output dtype always matches x regardless of promotion.
    o_ref[...] = (s_ref[...].astype(x_ref.dtype) * x_ref[...]).astype(o_ref.dtype)


def _tpu_generation() -> str:
    try:
        kind = jax.devices()[0].device_kind.lower()
    except Exception:
        return "unknown"
    if "v7" in kind:
        return "v7"
    if "v6" in kind:
        return "v6"
    if "v5" in kind:
        return "v5"
    return "unknown"


def _default_block_bytes(gen: str) -> int:
    # v7x: 3.2 TB/s HBM -> bigger blocks amortize the ~0.35 us per-step cost.
    # v6e: 4 MiB is a small free win (86% vs 85% of roofline), inside defaults.
    # v5e / unknown: stay at 2 MiB (16 MiB scoped-VMEM default, ~0.82 TB/s HBM).
    if gen == "v7":
        return 8 << 20
    if gen == "v6":
        return 4 << 20
    return 2 << 20


def _round_down(x: int, unit: int) -> int:
    return max(unit, (x // unit) * unit)


def _pick_tiles(r_total: int, l_total: int, itemsize: int, target_block_bytes: int):
    """Pick (rb, lb) such that rb * lb * itemsize <= target_block_bytes.

    Each dim is either a tile-aligned size (multiple of 128 for lanes,
    sublane_unit for sublanes) with a cdiv grid + masked edge blocks, or the
    full array dim (always legal).
    """
    target_elems = max(1, target_block_bytes // itemsize)
    sublane_unit = max(8, 32 // itemsize)  # 8 for f32, 16 for bf16, 32 for int8

    # Lane (last) dim: cap so even a minimal-height (sublane_unit-row) block
    # still fits the byte budget.
    lane_budget = max(128, target_elems // sublane_unit)
    if l_total <= lane_budget:
        lb = l_total                       # full dim: always legal
    else:
        lb = _round_down(lane_budget, 128)  # multiple of 128; edges masked

    # Sublane (second-to-last) dim under the remaining budget.
    row_budget = max(sublane_unit, target_elems // lb)
    if r_total <= row_budget:
        rb = r_total                        # full dim: always legal
    else:
        rb = _round_down(row_budget, sublane_unit)
    return rb, lb


def mask_1chanle(x: jax.Array, p: jax.Array, *,
                 min_pallas_bytes: int = 1 << 20,
                 target_block_bytes: int | None = None,
                 donate_x: bool = False) -> jax.Array:
    """x: (N, C, H, W), p: (1, C, 1, 1) -> (N, C, H, W), y = p * x."""
    N, C, H, W = x.shape
    assert p.shape == (1, C, 1, 1)
    p = p.astype(x.dtype)  # avoid dtype promotion surprises inside the kernel

    # Tiny inputs cannot amortize pallas_call + pipeline overhead; also prefer
    # fusing this +-1 per-channel scale into neighbors whenever possible.
    if x.size * x.dtype.itemsize < min_pallas_bytes:
        return p * x

    if target_block_bytes is None:
        target_block_bytes = _default_block_bytes(_tpu_generation())

    r_total = N * C
    l_total = H * W
    itemsize = x.dtype.itemsize
    x2 = x.reshape(r_total, l_total)

    # Per-row scale: row (n, c) uses p[0, c, 0, 0]. Shape (N*C, 1).
    scales = jnp.broadcast_to(p.reshape(1, C), (N, C)).reshape(r_total, 1)

    rb, lb = _pick_tiles(r_total, l_total, itemsize, target_block_bytes)
    # Fixed tiles, cdiv grid; Pallas masks the (possibly partial) edge blocks.
    grid = (pl.cdiv(r_total, rb), pl.cdiv(l_total, lb))

    # Only raise the scoped-VMEM limit if the double-buffered footprint would
    # exceed the smallest per-generation default (16 MiB on v5e).
    block_bytes = rb * lb * itemsize
    vmem_needed = 4 * block_bytes + 4 * rb * itemsize + (1 << 20)
    vmem_limit = vmem_needed if vmem_needed > (16 << 20) else None

    cost = pl.CostEstimate(
        flops=x.size,
        transcendentals=0,
        bytes_accessed=2 * x.size * itemsize + r_total * itemsize,
    )

    kwargs = {}
    if donate_x:
        # y reuses x's HBM buffer (x is positional arg index 1 after scales).
        kwargs["input_output_aliases"] = {1: 0}

    y2 = pl.pallas_call(
        _mask_kernel,
        out_shape=jax.ShapeDtypeStruct((r_total, l_total), x.dtype),
        grid_spec=pltpu.PrefetchScalarGridSpec(
            num_scalar_prefetch=0,
            grid=grid,  # cols innermost: scale block index constant -> DMA elided
            in_specs=[
                pl.BlockSpec((rb, 1), lambda i, j: (i, 0)),   # per-row scales
                pl.BlockSpec((rb, lb), lambda i, j: (i, j)),  # data slab
            ],
            out_specs=pl.BlockSpec((rb, lb), lambda i, j: (i, j)),
        ),
        compiler_params=pltpu.CompilerParams(
            dimension_semantics=("parallel", "parallel"),
            vmem_limit_bytes=vmem_limit,
        ),
        cost_estimate=cost,
        **kwargs,
    )(scales, x2)

    return y2.reshape(N, C, H, W)


def make_params(c: int, dtype=jnp.float32) -> jax.Array:
    """Deterministic init matching the PyTorch __init__:
    p = ones((1, c, 1, 1)); p[0, i] = -1 for even i."""
    ch = jnp.arange(c)
    vals = jnp.where(ch % 2 == 0, -1.0, 1.0).astype(dtype)
    return vals.reshape(1, c, 1, 1)


if __name__ == "__main__":
    key = jax.random.PRNGKey(0)

    # Primary test at the module's natural small shape; force the Pallas path.
    N, C, H, W = 2, 4, 16, 16
    x = jax.random.normal(key, (N, C, H, W), dtype=jnp.float32)
    p = make_params(C)
    y = jax.block_until_ready(mask_1chanle(x, p, min_pallas_bytes=0))
    y_ref = p * x
    assert y.shape == x.shape and y.dtype == x.dtype
    assert jnp.allclose(y, y_ref), "mismatch vs reference (primary)"

    # Secondary test: awkward (non-multiple-of-128) spatial size with a tiny
    # block budget so the cdiv grid + masked edge blocks are exercised.
    key2 = jax.random.split(key)[0]
    x2 = jax.random.normal(key2, (1, 4, 56, 56), dtype=jnp.float32)
    p2 = make_params(4)
    y2 = jax.block_until_ready(
        mask_1chanle(x2, p2, min_pallas_bytes=0, target_block_bytes=8 * 256 * 4))
    assert jnp.allclose(y2, p2 * x2), "mismatch vs reference (edge-block test)"

    print("KERNEL_OK")
</pallas_src>

<mosaic_0001>
module attributes {stable_mosaic.version = 11 : i64} {
  func.func @_mask_kernel(%arg0: i32, %arg1: i32, %arg2: memref<8x1xf32, #tpu.memory_space<vmem>>, %arg3: memref<8x256xf32, #tpu.memory_space<vmem>>, %arg4: memref<8x256xf32, #tpu.memory_space<vmem>>) attributes {dimension_semantics = [#tpu.dimension_semantics<parallel>, #tpu.dimension_semantics<parallel>], iteration_bounds = array<i64: 1, 1>, scalar_prefetch = 0 : i64, scratch_operands = 0 : i64, tpu.core_type = #tpu.core_type<tc>, window_params = [{transform_indices = @transform_0, window_bounds = array<i64: 8, 1>}, {transform_indices = @transform_1, window_bounds = array<i64: 8, 256>}, {transform_indices = @transform_2, window_bounds = array<i64: 8, 256>}]} {
    %c0 = arith.constant 0 : index
    %c0_0 = arith.constant 0 : index
    %0 = vector.load %arg2[%c0, %c0_0] : memref<8x1xf32, #tpu.memory_space<vmem>>, vector<8x1xf32>
    %c0_1 = arith.constant 0 : index
    %c0_2 = arith.constant 0 : index
    %1 = vector.load %arg3[%c0_1, %c0_2] : memref<8x256xf32, #tpu.memory_space<vmem>>, vector<8x256xf32>
    %2 = vector.broadcast %0 : vector<8x1xf32> to vector<8x256xf32>
    %3 = arith.mulf %2, %1 : vector<8x256xf32>
    %c0_3 = arith.constant 0 : index
    %c0_4 = arith.constant 0 : index
    %4 = vector.load %arg4[%c0_3, %c0_4] : memref<8x256xf32, #tpu.memory_space<vmem>>, vector<8x256xf32>
    tpu.vector_store %arg4[%c0_3, %c0_4], %3 {strides = array<i32>} : memref<8x256xf32, #tpu.memory_space<vmem>>, vector<8x256xf32>,
    return
  }
  func.func @transform_0(%arg0: i32, %arg1: i32) -> (i32, i32) {
    %c0_i32 = arith.constant 0 : i32
    %c0_i32_0 = arith.constant 0 : i32
    return %arg0, %c0_i32 : i32, i32
  }
  func.func @transform_1(%arg0: i32, %arg1: i32) -> (i32, i32) {
    %c0_i32 = arith.constant 0 : i32
    return %arg0, %arg1 : i32, i32
  }
  func.func @transform_2(%arg0: i32, %arg1: i32) -> (i32, i32) {
    %c0_i32 = arith.constant 0 : i32
    return %arg0, %arg1 : i32, i32
  }
}

</mosaic_0001>

<llo_original>
// kernel: tpu_custom_call.1
$region0: #{tpu_custom_call.1}
  #allocation0 [shape = 'u32[]', space=smem, size = 0x4, offset = 0x4, fixed_abs, tag = 'smem constant byte address 0x4 - core index']
  #allocation1 [shape = 'u32[144,128]{1,0:T(1,128)}', space=vmem, size = 0x12000, scoped, tag = 'internal scratch']
  %s0 = inlined_call_operand.vmem [shape: f32[8,1], index: 0, kind: input, shape index: {}]
  %s1 = inlined_call_operand.hbm [shape: f32[8,256], index: 1, kind: input, shape index: {}]
  %s2 = inlined_call_operand.hbm [shape: f32[8,256], index: 2, kind: output, shape index: {}]
  %s3 = sld [smem:[#allocation0]]
  $region22: #{tpu_custom_call.1} parent=0
    _
  %s5 = ssub.s32 1, %s3
  %s6 = scalar_select 0, %s5, %s3
  $region1: #{tpu_custom_call.1} parent=0
    #allocation2 [shape = 'u8[8192]{0}', space=vmem, size = 0x2000, scoped, tag = 'input window, operand 1, single buffered']
    #allocation3 [shape = 's32[1]{0}', space=sflag, size = 0x4, scoped, tag = 'scoped memory for tpu_custom_call.1']
    #allocation4 [shape = 's32[1]{0}', space=sflag, size = 0x4, scoped, tag = 'scoped memory for tpu_custom_call.1']
    #allocation5 [shape = 'u8[8192]{0}', space=vmem, size = 0x2000, scoped, tag = 'output window, operand 0, single buffered']
    %7 = vsyncpa [#allocation3], 0
    %8 = vsyncpa [#allocation4], 0
    // Predicated region
    $region2: #{tpu_custom_call.1} parent=1 // pred_check
      _
    $region3: #{tpu_custom_call.1} parent=1 // pred_check_branch
      %10 = sbr.rel (0) target = $region5
    $region4: #{tpu_custom_call.1} parent=1 // pred_region
      _
    $region5: #{tpu_custom_call.1} parent=1 // pred_fallthru
      _
    // Predicated region
    $region6: #{tpu_custom_call.1} parent=1 // pred_check
      _
    $region7: #{tpu_custom_call.1} parent=1 // pred_check_branch
      %12 = sbr.rel (0) target = $region9
    $region8: #{tpu_custom_call.1} parent=1 // pred_region
      %s14 = ssub.s32 256, 256
      %15 = vsyncadd [#allocation3], %s14
      %s17 = sshll.u32 [#allocation2], 4
      %s18 = int_to_ptr.vmem [resolvable:$true] %s17
      %20 = dma.hbm_to_vmem [thread:$0]  %s1, 256, %s18, [#allocation3]
    $region9: #{tpu_custom_call.1} parent=1 // pred_fallthru
      _
    // Predicated region
    $region10: #{tpu_custom_call.1} parent=1 // pred_check
      _
    $region11: #{tpu_custom_call.1} parent=1 // pred_check_branch
      %22 = sbr.rel (0) target = $region13
    $region12: #{tpu_custom_call.1} parent=1 // pred_region
      %23 = dma.done [#allocation3], 256
    $region13: #{tpu_custom_call.1} parent=1 // pred_fallthru
      _
    %v24 = vld [vmem:[%s0] sm:$0xff]
    %v25 = vld [vmem:[#allocation2] sm:$0xff]
    %v26 = vld [vmem:[#allocation2 + $0x8] sm:$0xff]
    %28 = vset.pattern.permute.xlu0 0
    %29 = vperm.xlu0 %28, %v24
    %v30 = vpop.permute.xlu0 %29
    %v32 = vmul.f32 %v30, %v25
    %v33 = vmul.f32 %v30, %v26
    %34 = vst [vmem:[#allocation5] sm:$0xff] %v32
    %35 = vst [vmem:[#allocation5 + $0x8] sm:$0xff] %v33
    // Predicated region
    $region14: #{tpu_custom_call.1} parent=1 // pred_check
      _
    $region15: #{tpu_custom_call.1} parent=1 // pred_check_branch
      %37 = sbr.rel (0) target = $region17
    $region16: #{tpu_custom_call.1} parent=1 // pred_region
      %s39 = ssub.s32 256, 256
      %40 = vsyncadd [#allocation4], %s39
      %s42 = sshll.u32 [#allocation5], 4
      %s43 = int_to_ptr.vmem [resolvable:$true] %s42
      %45 = dma.vmem_to_hbm [thread:$0]  %s43, 256, %s2, [#allocation4]
    $region17: #{tpu_custom_call.1} parent=1 // pred_fallthru
      _
    // Predicated region
    $region18: #{tpu_custom_call.1} parent=1 // pred_check
      _
    $region19: #{tpu_custom_call.1} parent=1 // pred_check_branch
      %47 = sbr.rel (0) target = $region21
    $region20: #{tpu_custom_call.1} parent=1 // pred_region
      %48 = dma.done [#allocation4], 256
    $region21: #{tpu_custom_call.1} parent=1 // pred_fallthru
      _
    %49 = vsyncpa [#allocation3], 1
    %50 = vsyncpa [#allocation4], 1

</llo_original>
